<compile_context>
chip_gen: v6e
topology: v6e:2x2x1
jax: 0.10.0
libtpu: 0.0.40
codegen_flags: <defaults>
</compile_context>

<pallas_src>
import functools

import jax
import jax.numpy as jnp
from jax.experimental import pallas as pl
from jax.experimental.pallas import tpu as pltpu


# ----------------------------- sizing helpers --------------------------------

def _cdiv(a, b):
    return -(-a // b)


def _round_down(x, m):
    return (x // m) * m


@functools.lru_cache(maxsize=None)
def _vmem_limit_bytes():
    """Generation-aware VMEM limit for CompilerParams(vmem_limit_bytes=...)."""
    cap = None
    try:
        cap = getattr(pltpu.get_tpu_info(), "vmem_capacity_bytes", None)
    except Exception:
        cap = None
    if not cap or cap <= 0:
        cap = 64 * 1024 * 1024  # conservative fallback (v7x-sized)
    # ~25% headroom for compiler scratch / pipeline bookkeeping; clamp to [32, 96] MiB.
    return int(max(32 * 1024 * 1024, min((int(cap) * 3) // 4, 96 * 1024 * 1024)))


def _element_budgets(vmem_limit, itemsize):
    """Max x-block elements for the fused path and the tiled (stats/normalize) path.

    Counts double-buffered input+output blocks in the input dtype plus ~2 full-block
    f32 temporaries materialized inside the kernel, with extra slack.
    """
    fused = max(1, vmem_limit // (4 * itemsize + 16))
    tiled = max(1, (fused * 3) // 4)
    return fused, tiled


def _sublane_step(itemsize):
    """Channel-tile granularity = sublane packing: f32->8, bf16->16, int8/fp8->32."""
    return max(8, 32 // max(1, itemsize))


def _pick_channel_tile(C, step, cap):
    """Multiple-of-`step` channel tile (or full C). No divisor requirement (cdiv grid)."""
    if C <= cap:
        return C
    return max(step, _round_down(cap, step))


def _pick_lane_tile(HW, c_tile, tile_elems, max_hw_tile=None):
    """Budget-driven multiple-of-128 lane tile (or full HW). No divisor requirement."""
    if HW <= 128:
        return HW
    if c_tile * HW <= tile_elems and (max_hw_tile is None or HW <= max_hw_tile):
        return HW
    cap = max(128, tile_elems // max(1, c_tile))
    if max_hw_tile is not None:
        cap = min(cap, max_hw_tile)
    return max(128, _round_down(min(HW, cap), 128))


# --------------------------------- kernels ------------------------------------

def _fused_bn_kernel(x_ref, out_ref, mean_ref, var_ref, *, inv_n, inv_nm1):
    """Single-read fused BN: full (B, c_tile, HW) slab resident in VMEM."""
    x = x_ref[...]                                   # (B, c_tile, HW)
    if x.dtype != jnp.float32:
        x = x.astype(jnp.float32)
    mean = jnp.sum(jnp.sum(x, axis=0), axis=-1, keepdims=True) * inv_n   # (c_tile, 1)
    diff = x - mean[None, :, :]
    var = jnp.sum(jnp.sum(diff * diff, axis=0), axis=-1, keepdims=True) * inv_nm1
    # NOTE: module multiplies by the raw variance (not 1/sqrt(var+eps)).
    out_ref[...] = (diff * var[None, :, :]).astype(out_ref.dtype)
    mean_ref[...] = mean
    var_ref[...] = var


def _fused_bn_hw1_kernel(x_ref, out_ref, mean_ref, var_ref, *, inv_n, inv_nm1):
    """HW==1 path: x viewed as (B, C) with channels lane-dense; reduce over sublanes."""
    x = x_ref[...]                                   # (B, c_lane)
    if x.dtype != jnp.float32:
        x = x.astype(jnp.float32)
    mean = jnp.sum(x, axis=0, keepdims=True) * inv_n          # (1, c_lane)
    diff = x - mean
    var = jnp.sum(diff * diff, axis=0, keepdims=True) * inv_nm1
    out_ref[...] = (diff * var).astype(out_ref.dtype)
    mean_ref[...] = mean
    var_ref[...] = var


def _stats_kernel(x_ref, mean_ref, var_ref, mean_acc, m2_acc, *,
                  HW, hw_tile, inv_nm1, needs_mask):
    """Tiled stats pass: per-channel (mean, M2) via Chan/Welford chunk merging."""
    b = pl.program_id(1)
    t = pl.program_id(2)
    nb = pl.num_programs(1)
    nt = pl.num_programs(2)

    @pl.when(jnp.logical_and(b == 0, t == 0))
    def _init():
        mean_acc[...] = jnp.zeros_like(mean_acc)
        m2_acc[...] = jnp.zeros_like(m2_acc)

    x = x_ref[0]                                     # (c_tile, hw_tile)
    if x.dtype != jnp.float32:
        x = x.astype(jnp.float32)

    if needs_mask:
        # Last lane tile is partial (cdiv grid): mask the out-of-bounds lanes.
        cnt_i = jnp.minimum(HW - t * hw_tile, hw_tile)
        cnt = cnt_i.astype(jnp.float32)
        lane = jax.lax.broadcasted_iota(jnp.int32, x.shape, 1)
        valid = lane < cnt_i
        xs = jnp.where(valid, x, 0.0)
        local_mean = jnp.sum(xs, axis=-1, keepdims=True) / cnt
        d = jnp.where(valid, x - local_mean, 0.0)
    else:
        cnt = float(hw_tile)
        local_mean = jnp.sum(x, axis=-1, keepdims=True) * (1.0 / float(hw_tile))
        d = x - local_mean
    local_m2 = jnp.sum(d * d, axis=-1, keepdims=True)

    # Elements merged so far (all earlier lane tiles within a batch are full).
    run_n = b.astype(jnp.float32) * float(HW) + t.astype(jnp.float32) * float(hw_tile)
    tot_n = run_n + cnt
    delta = local_mean - mean_acc[...]
    mean_acc[...] = mean_acc[...] + delta * (cnt / tot_n)
    m2_acc[...] = m2_acc[...] + local_m2 + (delta * delta) * (run_n * cnt / tot_n)

    @pl.when(jnp.logical_and(b == nb - 1, t == nt - 1))
    def _finalize():
        mean_ref[...] = mean_acc[...]
        var_ref[...] = m2_acc[...] * inv_nm1


def _normalize_kernel(x_ref, mean_ref, var_ref, out_ref):
    """Lane-dense normalize: out = (x - mean) * var per channel."""
    x = x_ref[...]                                   # (1, c_tile, hw_tile)
    if x.dtype != jnp.float32:
        x = x.astype(jnp.float32)
    mean = mean_ref[...][None, :, :]
    var = var_ref[...][None, :, :]
    out_ref[...] = ((x - mean) * var).astype(out_ref.dtype)


def _normalize_hw1_kernel(x_ref, mean_ref, var_ref, out_ref):
    """HW==1 normalize: x (b_tile, c_lane), mean/var (1, c_lane), channels lane-dense."""
    x = x_ref[...]
    if x.dtype != jnp.float32:
        x = x.astype(jnp.float32)
    out_ref[...] = ((x - mean_ref[...]) * var_ref[...]).astype(out_ref.dtype)


# -------------------------------- pallas calls ---------------------------------

def _normalize_call(x3, mean_c1, var_c1, c_tile, hw_tile, vmem_limit):
    B, C, HW = x3.shape
    grid = (_cdiv(C, c_tile), B, _cdiv(HW, hw_tile))
    return pl.pallas_call(
        _normalize_kernel,
        out_shape=jax.ShapeDtypeStruct((B, C, HW), x3.dtype),
        grid=grid,
        in_specs=[
            pl.BlockSpec((1, c_tile, hw_tile), lambda c, b, t: (b, c, t)),
            pl.BlockSpec((c_tile, 1), lambda c, b, t: (c, 0)),
            pl.BlockSpec((c_tile, 1), lambda c, b, t: (c, 0)),
        ],
        out_specs=pl.BlockSpec((1, c_tile, hw_tile), lambda c, b, t: (b, c, t)),
        compiler_params=pltpu.CompilerParams(
            dimension_semantics=("parallel", "parallel", "parallel"),
            vmem_limit_bytes=vmem_limit),
    )(x3, mean_c1, var_c1)


def _normalize_hw1_call(x2, mean_1c, var_1c, b_tile, c_lane, vmem_limit):
    B, C = x2.shape
    grid = (_cdiv(C, c_lane), _cdiv(B, b_tile))
    return pl.pallas_call(
        _normalize_hw1_kernel,
        out_shape=jax.ShapeDtypeStruct((B, C), x2.dtype),
        grid=grid,
        in_specs=[
            pl.BlockSpec((b_tile, c_lane), lambda c, b: (b, c)),
            pl.BlockSpec((1, c_lane), lambda c, b: (0, c)),
            pl.BlockSpec((1, c_lane), lambda c, b: (0, c)),
        ],
        out_specs=pl.BlockSpec((b_tile, c_lane), lambda c, b: (b, c)),
        compiler_params=pltpu.CompilerParams(
            dimension_semantics=("parallel", "parallel"),
            vmem_limit_bytes=vmem_limit),
    )(x2, mean_1c, var_1c)


# ---------------------------------- forward ------------------------------------

def simple_bn_forward(x, running_mean, running_var, momentum=0.1, *,
                      training=True, force_two_pass=False, max_hw_tile=None):
    """SimpleBN forward.

    x: (B, C, H, W) or (B, C). Returns (out [4-D], new_running_mean, new_running_var).
    """
    if x.ndim == 2:
        x = x[:, :, None, None]
    B, C, H, W = x.shape
    HW = H * W
    N = B * HW
    itemsize = x.dtype.itemsize
    step = _sublane_step(itemsize)
    vmem_limit = _vmem_limit_bytes()
    fused_elems, tile_elems = _element_budgets(vmem_limit, itemsize)

    inv_n = 1.0 / float(N)
    # torch .var() (unbiased) is NaN for a single element; mirror that.
    inv_nm1 = (1.0 / float(N - 1)) if N > 1 else float("nan")

    # ----------------------- HW == 1: lane-dense (B, C) layout -----------------------
    if HW == 1:
        x2 = x.reshape(B, C)                    # free view; channels on the lane axis

        if not training:
            c_lane = C if C <= 128 else max(128, _round_down(min(C, 8192), 128))
            rows_cap = max(8, tile_elems // max(1, c_lane))
            b_tile = B if B <= rows_cap else max(8, _round_down(rows_cap, 8))
            out2 = _normalize_hw1_call(
                x2,
                running_mean.astype(jnp.float32)[None, :],
                running_var.astype(jnp.float32)[None, :],
                b_tile, c_lane, vmem_limit)
            return out2.reshape(B, C, 1, 1), running_mean, running_var

        if C <= 128 or B * C <= fused_elems:
            c_lane = C
        else:
            c_lane = max(128, _round_down(min(C, max(128, fused_elems // max(1, B))), 128))
        if _cdiv(C, c_lane) < 2 and C > 128:
            c_lane = max(128, _round_down((C + 1) // 2, 128))   # >=2 steps for megacore

        out2, mean_1c, var_1c = pl.pallas_call(
            functools.partial(_fused_bn_hw1_kernel, inv_n=inv_n, inv_nm1=inv_nm1),
            out_shape=(
                jax.ShapeDtypeStruct((B, C), x.dtype),
                jax.ShapeDtypeStruct((1, C), jnp.float32),
                jax.ShapeDtypeStruct((1, C), jnp.float32),
            ),
            grid=(_cdiv(C, c_lane),),
            in_specs=[pl.BlockSpec((B, c_lane), lambda c: (0, c))],
            out_specs=(
                pl.BlockSpec((B, c_lane), lambda c: (0, c)),
                pl.BlockSpec((1, c_lane), lambda c: (0, c)),
                pl.BlockSpec((1, c_lane), lambda c: (0, c)),
            ),
            compiler_params=pltpu.CompilerParams(
                dimension_semantics=("parallel",),
                vmem_limit_bytes=vmem_limit),
        )(x2)

        mean = mean_1c[0]
        var = var_1c[0]
        out = out2.reshape(B, C, 1, 1)
        new_rm = running_mean * momentum + mean * (1.0 - momentum)
        new_rv = running_var * momentum + var * (1.0 - momentum)
        return out, new_rm, new_rv

    # ----------------------- HW > 1: (B, C, HW) layout, HW lane-dense ----------------
    x3 = x.reshape(B, C, HW)                    # free view (no HBM movement)

    if not training:
        c_tile = _pick_channel_tile(C, step, 256)
        hw_tile = _pick_lane_tile(HW, c_tile, tile_elems, max_hw_tile)
        out3 = _normalize_call(
            x3,
            running_mean.astype(jnp.float32)[:, None],
            running_var.astype(jnp.float32)[:, None],
            c_tile, hw_tile, vmem_limit)
        return out3.reshape(B, C, H, W), running_mean, running_var

    # Fused single-read path whenever a (B, c_tile, HW) slab fits the VMEM budget.
    max_c_fused = fused_elems // max(1, B * HW)
    if max_c_fused >= C:
        c_tile_f = C
    else:
        c_tile_f = _round_down(max_c_fused, step)
    use_fused = (not force_two_pass) and (c_tile_f > 0) and (c_tile_f >= min(C, step))

    if use_fused:
        if _cdiv(C, c_tile_f) < 2 and C > step:
            # Guarantee >=2 grid steps on the leading "parallel" axis (v7x megacore).
            c_tile_f = max(step, _round_down((C + 1) // 2, step))
        out3, mean_c1, var_c1 = pl.pallas_call(
            functools.partial(_fused_bn_kernel, inv_n=inv_n, inv_nm1=inv_nm1),
            out_shape=(
                jax.ShapeDtypeStruct((B, C, HW), x.dtype),
                jax.ShapeDtypeStruct((C, 1), jnp.float32),
                jax.ShapeDtypeStruct((C, 1), jnp.float32),
            ),
            grid=(_cdiv(C, c_tile_f),),
            in_specs=[pl.BlockSpec((B, c_tile_f, HW), lambda c: (0, c, 0))],
            out_specs=(
                pl.BlockSpec((B, c_tile_f, HW), lambda c: (0, c, 0)),
                pl.BlockSpec((c_tile_f, 1), lambda c: (c, 0)),
                pl.BlockSpec((c_tile_f, 1), lambda c: (c, 0)),
            ),
            compiler_params=pltpu.CompilerParams(
                dimension_semantics=("parallel",),
                vmem_limit_bytes=vmem_limit),
        )(x3)
    else:
        # Tiled two-pass: stats (scratch accumulators, reduction axes last) + normalize.
        c_tile = _pick_channel_tile(C, step, 256)
        hw_tile = _pick_lane_tile(HW, c_tile, tile_elems, max_hw_tile)
        needs_mask = (HW % hw_tile) != 0

        mean_c1, var_c1 = pl.pallas_call(
            functools.partial(_stats_kernel, HW=HW, hw_tile=hw_tile,
                              inv_nm1=inv_nm1, needs_mask=needs_mask),
            out_shape=(
                jax.ShapeDtypeStruct((C, 1), jnp.float32),
                jax.ShapeDtypeStruct((C, 1), jnp.float32),
            ),
            grid=(_cdiv(C, c_tile), B, _cdiv(HW, hw_tile)),
            # NOTE: if profiling shows exposed DMA here, add
            #   pipeline_mode=pl.Buffered(3)   to the x BlockSpec below.
            in_specs=[pl.BlockSpec((1, c_tile, hw_tile), lambda c, b, t: (b, c, t))],
            out_specs=(
                pl.BlockSpec((c_tile, 1), lambda c, b, t: (c, 0)),
                pl.BlockSpec((c_tile, 1), lambda c, b, t: (c, 0)),
            ),
            scratch_shapes=[
                pltpu.VMEM((c_tile, 1), jnp.float32),   # running mean
                pltpu.VMEM((c_tile, 1), jnp.float32),   # running M2
            ],
            compiler_params=pltpu.CompilerParams(
                dimension_semantics=("parallel", "arbitrary", "arbitrary"),
                vmem_limit_bytes=vmem_limit),
        )(x3)

        out3 = _normalize_call(x3, mean_c1, var_c1, c_tile, hw_tile, vmem_limit)

    out = out3.reshape(B, C, H, W)
    mean = mean_c1[:, 0]
    var = var_c1[:, 0]

    # Running-stat EMA with the module's (reversed) convention.
    new_rm = running_mean * momentum + mean * (1.0 - momentum)
    new_rv = running_var * momentum + var * (1.0 - momentum)
    return out, new_rm, new_rv


# --------------------------------- reference ------------------------------------

def simple_bn_reference(x, running_mean, running_var, momentum=0.1):
    if x.ndim == 2:
        x = x[:, :, None, None]
    B, C, H, W = x.shape
    y = jnp.transpose(x, (1, 0, 2, 3)).reshape(C, -1)
    mean = jnp.mean(y, axis=-1)
    var = jnp.var(y, axis=-1, ddof=1)
    out = (x - mean[None, :, None, None]) * var[None, :, None, None]
    new_rm = running_mean * momentum + mean * (1.0 - momentum)
    new_rv = running_var * momentum + var * (1.0 - momentum)
    return out, new_rm, new_rv


if __name__ == "__main__":
    key = jax.random.PRNGKey(0)

    # 1) Fused single-read path (4-D input, fits VMEM budget).
    B, C, H, W = 2, 4, 16, 16
    kx, k2 = jax.random.split(key)
    x = jax.random.normal(kx, (B, C, H, W), dtype=jnp.float32)
    rm0 = jnp.zeros((C,), jnp.float32)
    rv0 = jnp.zeros((C,), jnp.float32)
    # Affine weight/bias exist on the module but are unused in forward (parameter fidelity only).

    ref_out, ref_rm, ref_rv = simple_bn_reference(x, rm0, rv0, momentum=0.1)
    out, rm, rv = simple_bn_forward(x, rm0, rv0, momentum=0.1)
    out, rm, rv = jax.block_until_ready((out, rm, rv))
    assert out.shape == (B, C, H, W)
    assert jnp.allclose(out, ref_out, atol=1e-4, rtol=1e-4)
    assert jnp.allclose(rm, ref_rm, atol=1e-5, rtol=1e-5)
    assert jnp.allclose(rv, ref_rv, atol=1e-5, rtol=1e-5)

    # 2) Tiled two-pass path with a non-multiple-of-128 spatial extent (masked partial lane tile).
    B2, C2, H2, W2 = 2, 8, 10, 13            # HW = 130
    x2 = jax.random.normal(k2, (B2, C2, H2, W2), dtype=jnp.float32)
    rm2_0 = jnp.zeros((C2,), jnp.float32)
    rv2_0 = jnp.zeros((C2,), jnp.float32)
    ref2 = simple_bn_reference(x2, rm2_0, rv2_0, momentum=0.1)
    got2 = simple_bn_forward(x2, rm2_0, rv2_0, momentum=0.1,
                             force_two_pass=True, max_hw_tile=128)
    got2 = jax.block_until_ready(got2)
    assert jnp.allclose(got2[0], ref2[0], atol=1e-4, rtol=1e-4)
    assert jnp.allclose(got2[1], ref2[1], atol=1e-5, rtol=1e-5)
    assert jnp.allclose(got2[2], ref2[2], atol=1e-5, rtol=1e-5)

    # 3) 2-D input -> HW == 1 lane-dense path.
    B3, C3 = 8, 32
    x3 = jax.random.normal(jax.random.PRNGKey(3), (B3, C3), dtype=jnp.float32)
    rm3_0 = jnp.zeros((C3,), jnp.float32)
    rv3_0 = jnp.zeros((C3,), jnp.float32)
    ref3 = simple_bn_reference(x3, rm3_0, rv3_0, momentum=0.1)
    got3 = simple_bn_forward(x3, rm3_0, rv3_0, momentum=0.1)
    got3 = jax.block_until_ready(got3)
    assert got3[0].shape == (B3, C3, 1, 1)
    assert jnp.allclose(got3[0], ref3[0], atol=1e-4, rtol=1e-4)
    assert jnp.allclose(got3[1], ref3[1], atol=1e-5, rtol=1e-5)
    assert jnp.allclose(got3[2], ref3[2], atol=1e-5, rtol=1e-5)

    # 4) Eval mode: out = (x - running_mean) * running_var  (4-D and 2-D inputs).
    out_eval, _, _ = simple_bn_forward(x, ref_rm, ref_rv, momentum=0.1, training=False)
    out_eval = jax.block_until_ready(out_eval)
    ref_eval = (x - ref_rm[None, :, None, None]) * ref_rv[None, :, None, None]
    assert jnp.allclose(out_eval, ref_eval, atol=1e-4, rtol=1e-4)

    out_eval2, _, _ = simple_bn_forward(x3, ref3[1], ref3[2], momentum=0.1, training=False)
    out_eval2 = jax.block_until_ready(out_eval2)
    ref_eval2 = (x3[:, :, None, None] - ref3[1][None, :, None, None]) * ref3[2][None, :, None, None]
    assert jnp.allclose(out_eval2, ref_eval2, atol=1e-4, rtol=1e-4)

    print("KERNEL_OK")
</pallas_src>

<mosaic_0001>
module attributes {stable_mosaic.version = 11 : i64} {
  func.func @_fused_bn_kernel(%arg0: i32, %arg1: memref<2x4x256xf32, #tpu.memory_space<vmem>>, %arg2: memref<2x4x256xf32, #tpu.memory_space<vmem>>, %arg3: memref<4x1xf32, #tpu.memory_space<vmem>>, %arg4: memref<4x1xf32, #tpu.memory_space<vmem>>) attributes {dimension_semantics = [#tpu.dimension_semantics<parallel>], iteration_bounds = array<i64: 1>, scalar_prefetch = 0 : i64, scratch_operands = 0 : i64, tpu.core_type = #tpu.core_type<tc>, window_params = [{transform_indices = @transform_0, window_bounds = array<i64: 2, 4, 256>}, {transform_indices = @transform_1, window_bounds = array<i64: 2, 4, 256>}, {transform_indices = @transform_2, window_bounds = array<i64: 4, 1>}, {transform_indices = @transform_3, window_bounds = array<i64: 4, 1>}]} {
    %c0 = arith.constant 0 : index
    %c0_0 = arith.constant 0 : index
    %c0_1 = arith.constant 0 : index
    %0 = vector.load %arg1[%c0, %c0_0, %c0_1] : memref<2x4x256xf32, #tpu.memory_space<vmem>>, vector<2x4x256xf32>
    %cst = arith.constant dense<0.000000e+00> : vector<4x256xf32>
    %1 = vector.multi_reduction <add>, %0, %cst [0] : vector<2x4x256xf32> to vector<4x256xf32>
    %cst_2 = arith.constant dense<0.000000e+00> : vector<4xf32>
    %2 = vector.multi_reduction <add>, %1, %cst_2 [1] : vector<4x256xf32> to vector<4xf32>
    %3 = vector.shape_cast %2 : vector<4xf32> to vector<4x1xf32>
    %cst_3 = arith.constant 0.001953125 : f32
    %4 = vector.broadcast %cst_3 : f32 to vector<4x1xf32>
    %5 = arith.mulf %3, %4 : vector<4x1xf32>
    %6 = vector.shape_cast %5 : vector<4x1xf32> to vector<1x4x1xf32>
    %7 = vector.broadcast %6 : vector<1x4x1xf32> to vector<2x4x256xf32>
    %8 = arith.subf %0, %7 : vector<2x4x256xf32>
    %9 = arith.mulf %8, %8 : vector<2x4x256xf32>
    %cst_4 = arith.constant dense<0.000000e+00> : vector<4x256xf32>
    %10 = vector.multi_reduction <add>, %9, %cst_4 [0] : vector<2x4x256xf32> to vector<4x256xf32>
    %cst_5 = arith.constant dense<0.000000e+00> : vector<4xf32>
    %11 = vector.multi_reduction <add>, %10, %cst_5 [1] : vector<4x256xf32> to vector<4xf32>
    %12 = vector.shape_cast %11 : vector<4xf32> to vector<4x1xf32>
    %cst_6 = arith.constant 0.00195694715 : f32
    %13 = vector.broadcast %cst_6 : f32 to vector<4x1xf32>
    %14 = arith.mulf %12, %13 : vector<4x1xf32>
    %15 = vector.shape_cast %14 : vector<4x1xf32> to vector<1x4x1xf32>
    %16 = vector.broadcast %15 : vector<1x4x1xf32> to vector<2x4x256xf32>
    %17 = arith.mulf %8, %16 : vector<2x4x256xf32>
    %c0_7 = arith.constant 0 : index
    %c0_8 = arith.constant 0 : index
    %c0_9 = arith.constant 0 : index
    %18 = vector.load %arg2[%c0_7, %c0_8, %c0_9] : memref<2x4x256xf32, #tpu.memory_space<vmem>>, vector<2x4x256xf32>
    tpu.vector_store %arg2[%c0_7, %c0_8, %c0_9], %17 {strides = array<i32>} : memref<2x4x256xf32, #tpu.memory_space<vmem>>, vector<2x4x256xf32>,
    %c0_10 = arith.constant 0 : index
    %c0_11 = arith.constant 0 : index
    %19 = vector.load %arg3[%c0_10, %c0_11] : memref<4x1xf32, #tpu.memory_space<vmem>>, vector<4x1xf32>
    tpu.vector_store %arg3[%c0_10, %c0_11], %5 {strides = array<i32>} : memref<4x1xf32, #tpu.memory_space<vmem>>, vector<4x1xf32>,
    %c0_12 = arith.constant 0 : index
    %c0_13 = arith.constant 0 : index
    %20 = vector.load %arg4[%c0_12, %c0_13] : memref<4x1xf32, #tpu.memory_space<vmem>>, vector<4x1xf32>
    tpu.vector_store %arg4[%c0_12, %c0_13], %14 {strides = array<i32>} : memref<4x1xf32, #tpu.memory_space<vmem>>, vector<4x1xf32>,
    return
  }
  func.func @transform_0(%arg0: i32) -> (i32, i32, i32) {
    %c0_i32 = arith.constant 0 : i32
    %c0_i32_0 = arith.constant 0 : i32
    %c0_i32_1 = arith.constant 0 : i32
    return %c0_i32, %arg0, %c0_i32_0 : i32, i32, i32
  }
  func.func @transform_1(%arg0: i32) -> (i32, i32, i32) {
    %c0_i32 = arith.constant 0 : i32
    %c0_i32_0 = arith.constant 0 : i32
    %c0_i32_1 = arith.constant 0 : i32
    return %c0_i32, %arg0, %c0_i32_0 : i32, i32, i32
  }
  func.func @transform_2(%arg0: i32) -> (i32, i32) {
    %c0_i32 = arith.constant 0 : i32
    %c0_i32_0 = arith.constant 0 : i32
    return %arg0, %c0_i32 : i32, i32
  }
  func.func @transform_3(%arg0: i32) -> (i32, i32) {
    %c0_i32 = arith.constant 0 : i32
    %c0_i32_0 = arith.constant 0 : i32
    return %arg0, %c0_i32 : i32, i32
  }
}

</mosaic_0001>

<llo_original>
// kernel: tpu_custom_call.1
$region0: #{tpu_custom_call.1}
  #allocation0 [shape = 'u32[]', space=smem, size = 0x4, offset = 0x4, fixed_abs, tag = 'smem constant byte address 0x4 - core index']
  #allocation1 [shape = 'u32[144,128]{1,0:T(1,128)}', space=vmem, size = 0x12000, scoped, tag = 'internal scratch']
  %s0 = inlined_call_operand.hbm [shape: f32[2,4,256], index: 0, kind: input, shape index: {}]
  %s1 = inlined_call_operand.hbm [shape: f32[2,4,256], index: 1, kind: output, shape index: {0}]
  %s2 = inlined_call_operand.vmem [shape: f32[4,1], index: 2, kind: output, shape index: {1}]
  %s3 = inlined_call_operand.vmem [shape: f32[4,1], index: 3, kind: output, shape index: {2}]
  %4 = xla_tuple %s1, %s2, %s3
  %s5 = sld [smem:[#allocation0]]
  $region34: #{tpu_custom_call.1} parent=0
    _
  %s7 = ssub.s32 1, %s5
  %s8 = scalar_select 0, %s7, %s5
  $region1: #{tpu_custom_call.1} parent=0
    #allocation2 [shape = 'u8[8192]{0}', space=vmem, size = 0x2000, scoped, tag = 'input window, operand 0, single buffered']
    #allocation3 [shape = 's32[1]{0}', space=sflag, size = 0x4, scoped, tag = 'scoped memory for tpu_custom_call.1']
    #allocation4 [shape = 's32[1]{0}', space=sflag, size = 0x4, scoped, tag = 'scoped memory for tpu_custom_call.1']
    #allocation5 [shape = 'u8[8192]{0}', space=vmem, size = 0x2000, scoped, tag = 'output window, operand 0, single buffered']
    %9 = vsyncpa [#allocation3], 0
    %10 = vsyncpa [#allocation4], 0
    // Predicated region
    $region2: #{tpu_custom_call.1} parent=1 // pred_check
      _
    $region3: #{tpu_custom_call.1} parent=1 // pred_check_branch
      %12 = sbr.rel (0) target = $region5
    $region4: #{tpu_custom_call.1} parent=1 // pred_region
      %s14 = ssub.s32 256, 256
      %15 = vsyncadd [#allocation3], %s14
      %s16 = sshll.u32 [#allocation2], 4
      %s17 = int_to_ptr.vmem [resolvable:$true] %s16
      %22 = dma.hbm_to_vmem [thread:$0]  %s0, 256, %s17, [#allocation3], 128, 128, 8
    $region5: #{tpu_custom_call.1} parent=1 // pred_fallthru
      _
    // Predicated region
    $region6: #{tpu_custom_call.1} parent=1 // pred_check
      _
    $region7: #{tpu_custom_call.1} parent=1 // pred_check_branch
      %24 = sbr.rel (0) target = $region9
    $region8: #{tpu_custom_call.1} parent=1 // pred_region
      %25 = dma.done [#allocation3], 256
    $region9: #{tpu_custom_call.1} parent=1 // pred_fallthru
      _
    %v26 = vld [vmem:[#allocation2] sm:$0xff]
    %v27 = vld [vmem:[#allocation2 + $0x8] sm:$0xff]
    %v30 = vcombine.high %v26, %v26
    %v31 = vcombine.high %v27, %v27
    %vm34 = vcmask 1043456
    %v35 = vsel %vm34, %v26, 0.0
    %v36 = vsel %vm34, %v27, 0.0
    %v37 = vadd.f32 %v35, %v36
    %v38 = vsel %vm34, %v30, 0.0
    %v39 = vsel %vm34, %v31, 0.0
    %v40 = vadd.f32 %v38, %v39
    %v41 = vsel %vm34, %v37, 0.0
    %v42 = vsel %vm34, %v40, 0.0
    %v43 = vadd.f32 %v41, %v42
    %44 = vadd.xlane.f32.xlu0 %v43
    %v45 = vpop.xlane.xlu0 %44
    %v46 = vmul.f32 %v45, 0.001953125
    %v49 = vunpack.c.l.s4 839922192
    %v50 = vunpack.c.0.s8 %v49
    %v51 = vlaneseq
    %v52 = vshrl.u32 %v51, 7
    %v53 = vsub.s32 %v50, %v52
    %v54 = vrot.slane %v46, %v53
    %v56 = vsub.f32 %v26, %v54
    %v57 = vsub.f32 %v27, %v54
    %v58 = vmul.f32 %v56, %v56
    %v59 = vmul.f32 %v57, %v57
    %v62 = vcombine.high %v58, %v58
    %v63 = vcombine.high %v59, %v59
    %v66 = vsel %vm34, %v58, 0.0
    %v67 = vsel %vm34, %v59, 0.0
    %v68 = vadd.f32 %v66, %v67
    %v69 = vsel %vm34, %v62, 0.0
    %v70 = vsel %vm34, %v63, 0.0
    %v71 = vadd.f32 %v69, %v70
    %v72 = vsel %vm34, %v68, 0.0
    %v73 = vsel %vm34, %v71, 0.0
    %v74 = vadd.f32 %v72, %v73
    %75 = vadd.xlane.f32.xlu0 %v74
    %v76 = vpop.xlane.xlu0 %75
    %v77 = vmul.f32 %v76, 0.0019569471
    %v80 = vunpack.c.l.s4 839922192
    %v81 = vunpack.c.0.s8 %v80
    %v82 = vlaneseq
    %v83 = vshrl.u32 %v82, 7
    %v84 = vsub.s32 %v81, %v83
    %v85 = vrot.slane %v77, %v84
    %v87 = vmul.f32 %v56, %v85
    %v88 = vmul.f32 %v57, %v85
    %89 = vst [vmem:[#allocation5] sm:$0xff] %v87
    %90 = vst [vmem:[#allocation5 + $0x8] sm:$0xff] %v88
    %vm91 = vcmask 3072
    %92 = vst.msk [vmem:[%s2] sm:$0xf] %vm91, %v46
    %93 = vst.msk [vmem:[%s3] sm:$0xf] %vm91, %v77
    // Predicated region
    $region10: #{tpu_custom_call.1} parent=1 // pred_check
      _
    $region11: #{tpu_custom_call.1} parent=1 // pred_check_branch
      %95 = sbr.rel (0) target = $region13
    $region12: #{tpu_custom_call.1} parent=1 // pred_region
      %s97 = ssub.s32 256, 256
      %98 = vsyncadd [#allocation4], %s97
      %s99 = sshll.u32 [#allocation5], 4
      %s100 = int_to_ptr.vmem [resolvable:$true] %s99
      %105 = dma.vmem_to_hbm [thread:$0]  %s100, 256, %s1, [#allocation4], 128, 128, 8
    $region13: #{tpu_custom_call.1} parent=1 // pred_fallthru
      _
    // Predicated region
    $region14: #{tpu_custom_call.1} parent=1 // pred_check
      _
    $region15: #{tpu_custom_call.1} parent=1 // pred_check_branch
      %107 = sbr.rel (0) target = $region17
    $region16: #{tpu_custom_call.1} parent=1 // pred_region
      _
    $region17: #{tpu_custom_call.1} parent=1 // pred_fallthru
      _
    // Predicated region
    $region18: #{tpu_custom_call.1} parent=1 // pred_check
      _
    $region19: #{tpu_custom_call.1} parent=1 // pred_check_branch
      %109 = sbr.rel (0) target = $region21
    $region20: #{tpu_custom_call.1} parent=1 // pred_region
      _
    $region21: #{tpu_custom_call.1} parent=1 // pred_fallthru
      _
    // Predicated region
    $region22: #{tpu_custom_call.1} parent=1 // pred_check
      _
    $region23: #{tpu_custom_call.1} parent=1 // pred_check_branch
      %111 = sbr.rel (0) target = $region25
    $region24: #{tpu_custom_call.1} parent=1 // pred_region
      %112 = dma.done [#allocation4], 256
    $region25: #{tpu_custom_call.1} parent=1 // pred_fallthru
      _
    // Predicated region
    $region26: #{tpu_custom_call.1} parent=1 // pred_check
      _
    $region27: #{tpu_custom_call.1} parent=1 // pred_check_branch
      %114 = sbr.rel (0) target = $region29
    $region28: #{tpu_custom_call.1} parent=1 // pred_region
      _
    $region29: #{tpu_custom_call.1} parent=1 // pred_fallthru
      _
    // Predicated region
    $region30: #{tpu_custom_call.1} parent=1 // pred_check
      _
    $region31: #{tpu_custom_call.1} parent=1 // pred_check_branch
      %116 = sbr.rel (0) target = $region33
    $region32: #{tpu_custom_call.1} parent=1 // pred_region
      _
    $region33: #{tpu_custom_call.1} parent=1 // pred_fallthru
      _
    %117 = vsyncpa [#allocation3], 1
    %118 = vsyncpa [#allocation4], 1

</llo_original>
